<compile_context>
chip_gen: v5e
topology: v5e:2x2
jax: 0.10.0
libtpu: 0.0.40
codegen_flags: <defaults>
</compile_context>

<pallas_src>
import functools

import jax
import jax.numpy as jnp
from jax.experimental import pallas as pl
from jax.experimental.pallas import tpu as pltpu


def _round_up(x, m):
    return ((x + m - 1) // m) * m


def _mlp_kernel(n_layers, *refs):
    """Fused MLP forward on one batch tile.

    refs = (x_ref, w0_ref, b0_ref, w1_ref, b1_ref, ..., w_out_ref, b_out_ref, out_ref)
    Hidden layers apply tanh; the final (output) layer does not.
    Matmuls run in the weights' dtype on the MXU with f32 accumulation; bias-add / tanh in f32.
    """
    x_ref = refs[0]
    out_ref = refs[-1]
    param_refs = refs[1:-1]

    h = x_ref[...]  # (TM, 250) activations in the streamed dtype

    for i in range(n_layers):
        w = param_refs[2 * i][...]            # (in_i, out_i) in compute dtype
        b = param_refs[2 * i + 1][...]        # (1, out_i) float32
        lhs = h if h.dtype == w.dtype else h.astype(w.dtype)
        h = jnp.dot(lhs, w, preferred_element_type=jnp.float32) + b
        if i < n_layers - 1:
            h = jnp.tanh(h)                   # Dropout == identity in eval mode

    out_ref[...] = h.astype(out_ref.dtype)


def _prep_params(params, n_pad, compute_dtype):
    """Cast weights to compute_dtype; zero-pad ONLY the last layer's output dim to n_pad.

    Zero padding of the output lanes is exact: padded lanes get zero weights + zero bias
    and are sliced off in the wrapper. Biases stay f32 (v5e-safe elementwise path).
    """
    n_layers = len(params)
    prepped = []
    for i, (w, b) in enumerate(params):
        w = jnp.asarray(w, jnp.float32)
        b = jnp.asarray(b, jnp.float32).reshape(1, -1)
        if i == n_layers - 1 and w.shape[1] < n_pad:
            w = jnp.pad(w, ((0, 0), (0, n_pad - w.shape[1])))
            b = jnp.pad(b, ((0, 0), (0, n_pad - b.shape[1])))
        prepped.append((w.astype(compute_dtype), b))
    return prepped


def ann_forward(x, params, *, tm=2048, compute_dtype=jnp.bfloat16, out_dtype=None):
    """x: (B, 250), f32 or bf16 (bf16 halves input HBM traffic).
    params: list of (W, b) with W (in, out), b (1, out) or (out,).
    Returns (B, n_class) logits in `out_dtype` (defaults to compute_dtype).
    """
    x = jnp.asarray(x)
    B, K = x.shape
    n_layers = len(params)
    n_class = params[-1][0].shape[1]
    if out_dtype is None:
        out_dtype = compute_dtype

    n_pad = _round_up(max(n_class, 128), 128)   # lane-dense (unmasked vst) output store

    # Batch tile: clamp for small B; ensure >=2 grid steps when possible so the "parallel"
    # axis can shard across v7x's two TensorCores. No batch padding: Pallas masks the
    # ragged last block (rows are independent, OOB rows are dropped on writeback).
    tm_eff = min(tm, _round_up(B, 8))
    if B > 8 and pl.cdiv(B, tm_eff) < 2:
        tm_eff = _round_up(pl.cdiv(B, 2), 8)
    grid = (pl.cdiv(B, tm_eff),)

    prepped_params = _prep_params(params, n_pad, compute_dtype)

    flat_params = []
    for w, b in prepped_params:
        flat_params.append(w)
        flat_params.append(b)

    kernel = functools.partial(_mlp_kernel, n_layers)

    # x/out: batch-tiled (auto double-buffered). weights/biases: constant index_map
    # -> fetched once and VMEM-resident across all grid steps.
    in_specs = [pl.BlockSpec((tm_eff, K), lambda i: (i, 0))]
    for w, b in prepped_params:
        in_specs.append(pl.BlockSpec(w.shape, lambda i: (0, 0)))
        in_specs.append(pl.BlockSpec(b.shape, lambda i: (0, 0)))
    out_specs = pl.BlockSpec((tm_eff, n_pad), lambda i: (i, 0))

    out = pl.pallas_call(
        kernel,
        out_shape=jax.ShapeDtypeStruct((B, n_pad), out_dtype),
        grid=grid,
        in_specs=in_specs,
        out_specs=out_specs,
        compiler_params=pltpu.CompilerParams(
            dimension_semantics=("parallel",)),   # shard batch tiles across TCs (v7x)
    )(x, *flat_params)

    # Under jit this slice fuses into the downstream consumer (no extra materialized pass).
    return out[:, :n_class]


def init_params(key, layers, n_class=3, in_dim=250):
    """Deterministic synthetic parameters matching the PyTorch module's shapes."""
    dims = [in_dim] + list(layers)
    params = []
    for i in range(len(dims) - 1):
        key, kw, kb = jax.random.split(key, 3)
        scale = 1.0 / jnp.sqrt(jnp.float32(dims[i]))
        w = jax.random.uniform(kw, (dims[i], dims[i + 1]), jnp.float32, -scale, scale)
        b = jax.random.uniform(kb, (1, dims[i + 1]), jnp.float32, -scale, scale)
        params.append((w, b))
    key, kw, kb = jax.random.split(key, 3)
    scale = 1.0 / jnp.sqrt(jnp.float32(dims[-1]))
    w = jax.random.uniform(kw, (dims[-1], n_class), jnp.float32, -scale, scale)
    b = jax.random.uniform(kb, (1, n_class), jnp.float32, -scale, scale)
    params.append((w, b))
    return params


def reference_forward(x, params, compute_dtype=jnp.float32):
    """Pure-JAX reference with the same precision policy as the kernel (f32 accumulation)."""
    h = jnp.asarray(x, jnp.float32)
    for w, b in params[:-1]:
        h = jnp.dot(h.astype(compute_dtype), jnp.asarray(w, jnp.float32).astype(compute_dtype),
                    preferred_element_type=jnp.float32) + jnp.asarray(b, jnp.float32).reshape(1, -1)
        h = jnp.tanh(h)
    w, b = params[-1]
    return jnp.dot(h.astype(compute_dtype), jnp.asarray(w, jnp.float32).astype(compute_dtype),
                   preferred_element_type=jnp.float32) + jnp.asarray(b, jnp.float32).reshape(1, -1)


if __name__ == "__main__":
    key = jax.random.PRNGKey(0)
    key, kx = jax.random.split(key)

    layers = [64, 32]          # hidden layer sizes
    n_class = 3
    B = 8
    in_dim = 250

    x = jax.random.normal(kx, (B, in_dim), jnp.float32)
    params = init_params(key, layers, n_class=n_class, in_dim=in_dim)

    # --- f32 path: tight check against the reference ---
    logits_f32 = jax.block_until_ready(ann_forward(x, params, compute_dtype=jnp.float32))
    ref_f32 = reference_forward(x, params, compute_dtype=jnp.float32)
    assert logits_f32.shape == (B, n_class)
    assert jnp.allclose(logits_f32, ref_f32, atol=1e-3, rtol=1e-3), "f32 mismatch vs reference"

    # --- bf16 path with f32 input (kernel casts per layer; no extra wrapper pass over x) ---
    logits_bf16 = jax.block_until_ready(ann_forward(x, params, compute_dtype=jnp.bfloat16))
    ref_bf16 = reference_forward(x, params, compute_dtype=jnp.bfloat16)
    assert logits_bf16.dtype == jnp.bfloat16
    assert jnp.allclose(logits_bf16.astype(jnp.float32), ref_bf16,
                        atol=1e-2, rtol=1e-2), "bf16 mismatch vs bf16 ref"
    assert jnp.allclose(logits_bf16.astype(jnp.float32), ref_f32,
                        atol=5e-2, rtol=5e-2), "bf16 drifted too far from f32"

    # --- larger, non-multiple batch with bf16 input streaming (halved input HBM),
    #     default tm (>=2 parallel grid steps, ragged last block masked by Pallas) ---
    key, kx2 = jax.random.split(key)
    B2 = 300
    x2 = jax.random.normal(kx2, (B2, in_dim), jnp.float32).astype(jnp.bfloat16)
    logits2 = jax.block_until_ready(ann_forward(x2, params, compute_dtype=jnp.bfloat16))
    ref2 = reference_forward(x2, params, compute_dtype=jnp.bfloat16)
    assert logits2.shape == (B2, n_class)
    assert jnp.allclose(logits2.astype(jnp.float32), ref2,
                        atol=1e-2, rtol=1e-2), "tiled-grid mismatch vs reference"

    print("KERNEL_OK")
</pallas_src>

<mosaic_0001>
module attributes {stable_mosaic.version = 11 : i64} {
  func.func @_mlp_kernel(%arg0: i32, %arg1: memref<8x250xf32, #tpu.memory_space<vmem>>, %arg2: memref<250x64xf32, #tpu.memory_space<vmem>>, %arg3: memref<1x64xf32, #tpu.memory_space<vmem>>, %arg4: memref<64x32xf32, #tpu.memory_space<vmem>>, %arg5: memref<1x32xf32, #tpu.memory_space<vmem>>, %arg6: memref<32x128xf32, #tpu.memory_space<vmem>>, %arg7: memref<1x128xf32, #tpu.memory_space<vmem>>, %arg8: memref<8x128xf32, #tpu.memory_space<vmem>>) attributes {dimension_semantics = [#tpu.dimension_semantics<parallel>], iteration_bounds = array<i64: 1>, scalar_prefetch = 0 : i64, scratch_operands = 0 : i64, tpu.core_type = #tpu.core_type<tc>, window_params = [{transform_indices = @transform_0, window_bounds = array<i64: 8, 250>}, {pipeline_mode = #tpu.pipeline_mode<synchronous>, transform_indices = @transform_1, window_bounds = array<i64: 250, 64>}, {pipeline_mode = #tpu.pipeline_mode<synchronous>, transform_indices = @transform_2, window_bounds = array<i64: 1, 64>}, {pipeline_mode = #tpu.pipeline_mode<synchronous>, transform_indices = @transform_3, window_bounds = array<i64: 64, 32>}, {pipeline_mode = #tpu.pipeline_mode<synchronous>, transform_indices = @transform_4, window_bounds = array<i64: 1, 32>}, {pipeline_mode = #tpu.pipeline_mode<synchronous>, transform_indices = @transform_5, window_bounds = array<i64: 32, 128>}, {pipeline_mode = #tpu.pipeline_mode<synchronous>, transform_indices = @transform_6, window_bounds = array<i64: 1, 128>}, {transform_indices = @transform_7, window_bounds = array<i64: 8, 128>}]} {
    %c0 = arith.constant 0 : index
    %c0_0 = arith.constant 0 : index
    %0 = vector.load %arg1[%c0, %c0_0] : memref<8x250xf32, #tpu.memory_space<vmem>>, vector<8x250xf32>
    %c0_1 = arith.constant 0 : index
    %c0_2 = arith.constant 0 : index
    %1 = vector.load %arg2[%c0_1, %c0_2] : memref<250x64xf32, #tpu.memory_space<vmem>>, vector<250x64xf32>
    %c0_3 = arith.constant 0 : index
    %c0_4 = arith.constant 0 : index
    %2 = vector.load %arg3[%c0_3, %c0_4] : memref<1x64xf32, #tpu.memory_space<vmem>>, vector<1x64xf32>
    %cst = arith.constant dense<0.000000e+00> : vector<8x64xf32>
    %3 = tpu.matmul %0, %1, %cst {dimension_numbers = #tpu.dot_dimension_numbers<[1], [0], [0], [1], [0, 0, 1, 1], [], []>} : vector<8x250xf32>, vector<250x64xf32>, vector<8x64xf32> -> vector<8x64xf32>
    %4 = vector.broadcast %2 : vector<1x64xf32> to vector<8x64xf32>
    %5 = arith.addf %3, %4 : vector<8x64xf32>
    %6 = math.tanh %5 : vector<8x64xf32>
    %c0_5 = arith.constant 0 : index
    %c0_6 = arith.constant 0 : index
    %7 = vector.load %arg4[%c0_5, %c0_6] : memref<64x32xf32, #tpu.memory_space<vmem>>, vector<64x32xf32>
    %c0_7 = arith.constant 0 : index
    %c0_8 = arith.constant 0 : index
    %8 = vector.load %arg5[%c0_7, %c0_8] : memref<1x32xf32, #tpu.memory_space<vmem>>, vector<1x32xf32>
    %cst_9 = arith.constant dense<0.000000e+00> : vector<8x32xf32>
    %9 = tpu.matmul %6, %7, %cst_9 {dimension_numbers = #tpu.dot_dimension_numbers<[1], [0], [0], [1], [0, 0, 1, 1], [], []>} : vector<8x64xf32>, vector<64x32xf32>, vector<8x32xf32> -> vector<8x32xf32>
    %10 = vector.broadcast %8 : vector<1x32xf32> to vector<8x32xf32>
    %11 = arith.addf %9, %10 : vector<8x32xf32>
    %12 = math.tanh %11 : vector<8x32xf32>
    %c0_10 = arith.constant 0 : index
    %c0_11 = arith.constant 0 : index
    %13 = vector.load %arg6[%c0_10, %c0_11] : memref<32x128xf32, #tpu.memory_space<vmem>>, vector<32x128xf32>
    %c0_12 = arith.constant 0 : index
    %c0_13 = arith.constant 0 : index
    %14 = vector.load %arg7[%c0_12, %c0_13] : memref<1x128xf32, #tpu.memory_space<vmem>>, vector<1x128xf32>
    %cst_14 = arith.constant dense<0.000000e+00> : vector<8x128xf32>
    %15 = tpu.matmul %12, %13, %cst_14 {dimension_numbers = #tpu.dot_dimension_numbers<[1], [0], [0], [1], [0, 0, 1, 1], [], []>} : vector<8x32xf32>, vector<32x128xf32>, vector<8x128xf32> -> vector<8x128xf32>
    %16 = vector.broadcast %14 : vector<1x128xf32> to vector<8x128xf32>
    %17 = arith.addf %15, %16 : vector<8x128xf32>
    %c0_15 = arith.constant 0 : index
    %c0_16 = arith.constant 0 : index
    %18 = vector.load %arg8[%c0_15, %c0_16] : memref<8x128xf32, #tpu.memory_space<vmem>>, vector<8x128xf32>
    tpu.vector_store %arg8[%c0_15, %c0_16], %17 {strides = array<i32>} : memref<8x128xf32, #tpu.memory_space<vmem>>, vector<8x128xf32>,
    return
  }
  func.func @transform_0(%arg0: i32) -> (i32, i32) {
    %c0_i32 = arith.constant 0 : i32
    %c0_i32_0 = arith.constant 0 : i32
    return %arg0, %c0_i32 : i32, i32
  }
  func.func @transform_1(%arg0: i32) -> (i32, i32) {
    %c0_i32 = arith.constant 0 : i32
    %c0_i32_0 = arith.constant 0 : i32
    %c0_i32_1 = arith.constant 0 : i32
    return %c0_i32, %c0_i32_0 : i32, i32
  }
  func.func @transform_2(%arg0: i32) -> (i32, i32) {
    %c0_i32 = arith.constant 0 : i32
    %c0_i32_0 = arith.constant 0 : i32
    %c0_i32_1 = arith.constant 0 : i32
    return %c0_i32, %c0_i32_0 : i32, i32
  }
  func.func @transform_3(%arg0: i32) -> (i32, i32) {
    %c0_i32 = arith.constant 0 : i32
    %c0_i32_0 = arith.constant 0 : i32
    %c0_i32_1 = arith.constant 0 : i32
    return %c0_i32, %c0_i32_0 : i32, i32
  }
  func.func @transform_4(%arg0: i32) -> (i32, i32) {
    %c0_i32 = arith.constant 0 : i32
    %c0_i32_0 = arith.constant 0 : i32
    %c0_i32_1 = arith.constant 0 : i32
    return %c0_i32, %c0_i32_0 : i32, i32
  }
  func.func @transform_5(%arg0: i32) -> (i32, i32) {
    %c0_i32 = arith.constant 0 : i32
    %c0_i32_0 = arith.constant 0 : i32
    %c0_i32_1 = arith.constant 0 : i32
    return %c0_i32, %c0_i32_0 : i32, i32
  }
  func.func @transform_6(%arg0: i32) -> (i32, i32) {
    %c0_i32 = arith.constant 0 : i32
    %c0_i32_0 = arith.constant 0 : i32
    %c0_i32_1 = arith.constant 0 : i32
    return %c0_i32, %c0_i32_0 : i32, i32
  }
  func.func @transform_7(%arg0: i32) -> (i32, i32) {
    %c0_i32 = arith.constant 0 : i32
    %c0_i32_0 = arith.constant 0 : i32
    return %arg0, %c0_i32 : i32, i32
  }
}

</mosaic_0001>

<llo_original>
// kernel: tpu_custom_call.1
$region0: #{tpu_custom_call.1}
  #allocation0 [shape = 'u32[]', space=smem, size = 0x4, offset = 0x4, fixed_abs, tag = 'smem constant byte address 0x4 - core index']
  #allocation1 [shape = 'u32[72,128]{1,0:T(1,128)}', space=vmem, size = 0x9000, scoped, tag = 'internal scratch']
  %s0 = inlined_call_operand.vmem [shape: f32[8,250], index: 0, kind: input, shape index: {}]
  %s1 = inlined_call_operand.vmem [shape: f32[250,64], index: 1, kind: input, shape index: {}]
  %s2 = inlined_call_operand.vmem [shape: f32[1,64], index: 2, kind: input, shape index: {}]
  %s3 = inlined_call_operand.vmem [shape: f32[64,32], index: 3, kind: input, shape index: {}]
  %s4 = inlined_call_operand.vmem [shape: f32[1,32], index: 4, kind: input, shape index: {}]
  %s5 = inlined_call_operand.vmem [shape: f32[32,128], index: 5, kind: input, shape index: {}]
  %s6 = inlined_call_operand.vmem [shape: f32[1,128], index: 6, kind: input, shape index: {}]
  %s7 = inlined_call_operand.hbm [shape: f32[8,128], index: 7, kind: output, shape index: {}]
  %s8 = sld [smem:[#allocation0]]
  $region38: #{tpu_custom_call.1} parent=0
    _
  %s10 = ssub.s32 1, %s8
  %s11 = scalar_select 0, %s10, %s8
  $region1: #{tpu_custom_call.1} parent=0
    #allocation2 [shape = 'u8[4096]{0}', space=vmem, size = 0x1000, scoped, tag = 'output window, operand 0, single buffered']
    #allocation3 [shape = 's32[1]{0}', space=sflag, size = 0x4, scoped, tag = 'scoped memory for tpu_custom_call.1']
    %12 = vsyncpa [#allocation3], 0
    // Predicated region
    $region2: #{tpu_custom_call.1} parent=1 // pred_check
      _
    $region3: #{tpu_custom_call.1} parent=1 // pred_check_branch
      %14 = sbr.rel (0) target = $region5
    $region4: #{tpu_custom_call.1} parent=1 // pred_region
      _
    $region5: #{tpu_custom_call.1} parent=1 // pred_fallthru
      _
    // Predicated region
    $region6: #{tpu_custom_call.1} parent=1 // pred_check
      _
    $region7: #{tpu_custom_call.1} parent=1 // pred_check_branch
      %16 = sbr.rel (0) target = $region9
    $region8: #{tpu_custom_call.1} parent=1 // pred_region
      _
    $region9: #{tpu_custom_call.1} parent=1 // pred_fallthru
      _
    // Predicated region
    $region10: #{tpu_custom_call.1} parent=1 // pred_check
      _
    $region11: #{tpu_custom_call.1} parent=1 // pred_check_branch
      %18 = sbr.rel (0) target = $region13
    $region12: #{tpu_custom_call.1} parent=1 // pred_region
      _
    $region13: #{tpu_custom_call.1} parent=1 // pred_fallthru
      _
    // Predicated region
    $region14: #{tpu_custom_call.1} parent=1 // pred_check
      _
    $region15: #{tpu_custom_call.1} parent=1 // pred_check_branch
      %20 = sbr.rel (0) target = $region17
    $region16: #{tpu_custom_call.1} parent=1 // pred_region
      _
    $region17: #{tpu_custom_call.1} parent=1 // pred_fallthru
      _
    // Predicated region
    $region18: #{tpu_custom_call.1} parent=1 // pred_check
      _
    $region19: #{tpu_custom_call.1} parent=1 // pred_check_branch
      %22 = sbr.rel (0) target = $region21
    $region20: #{tpu_custom_call.1} parent=1 // pred_region
      _
    $region21: #{tpu_custom_call.1} parent=1 // pred_fallthru
      _
    // Predicated region
    $region22: #{tpu_custom_call.1} parent=1 // pred_check
      _
    $region23: #{tpu_custom_call.1} parent=1 // pred_check_branch
      %24 = sbr.rel (0) target = $region25
    $region24: #{tpu_custom_call.1} parent=1 // pred_region
      _
    $region25: #{tpu_custom_call.1} parent=1 // pred_fallthru
      _
    // Predicated region
    $region26: #{tpu_custom_call.1} parent=1 // pred_check
      _
    $region27: #{tpu_custom_call.1} parent=1 // pred_check_branch
      %26 = sbr.rel (0) target = $region29
    $region28: #{tpu_custom_call.1} parent=1 // pred_region
      _
    $region29: #{tpu_custom_call.1} parent=1 // pred_fallthru
      _
    %v27 = vld [vmem:[%s0] sm:$0xff]
    %v28 = vld [vmem:[%s0 + $0x8] sm:$0xff]
    %v29 = vld [vmem:[%s1] sm:$0xff]
    %v30 = vld [vmem:[%s1 + $0x8] sm:$0xff]
    %v31 = vld [vmem:[%s1 + $0x10] sm:$0xff]
    %v32 = vld [vmem:[%s1 + $0x18] sm:$0xff]
    %v33 = vld [vmem:[%s1 + $0x20] sm:$0xff]
    %v34 = vld [vmem:[%s1 + $0x28] sm:$0xff]
    %v35 = vld [vmem:[%s1 + $0x30] sm:$0xff]
    %v36 = vld [vmem:[%s1 + $0x38] sm:$0xff]
    %v37 = vld [vmem:[%s1 + $0x40] sm:$0xff]
    %v38 = vld [vmem:[%s1 + $0x48] sm:$0xff]
    %v39 = vld [vmem:[%s1 + $0x50] sm:$0xff]
    %v40 = vld [vmem:[%s1 + $0x58] sm:$0xff]
    %v41 = vld [vmem:[%s1 + $0x60] sm:$0xff]
    %v42 = vld [vmem:[%s1 + $0x68] sm:$0xff]
    %v43 = vld [vmem:[%s1 + $0x70] sm:$0xff]
    %v44 = vld [vmem:[%s1 + $0x78] sm:$0xff]
    %v45 = vld [vmem:[%s1 + $0x80] sm:$0xff]
    %v46 = vld [vmem:[%s1 + $0x88] sm:$0xff]
    %v47 = vld [vmem:[%s1 + $0x90] sm:$0xff]
    %v48 = vld [vmem:[%s1 + $0x98] sm:$0xff]
    %v49 = vld [vmem:[%s1 + $0xa0] sm:$0xff]
    %v50 = vld [vmem:[%s1 + $0xa8] sm:$0xff]
    %v51 = vld [vmem:[%s1 + $0xb0] sm:$0xff]
    %v52 = vld [vmem:[%s1 + $0xb8] sm:$0xff]
    %v53 = vld [vmem:[%s1 + $0xc0] sm:$0xff]
    %v54 = vld [vmem:[%s1 + $0xc8] sm:$0xff]
    %v55 = vld [vmem:[%s1 + $0xd0] sm:$0xff]
    %v56 = vld [vmem:[%s1 + $0xd8] sm:$0xff]
    %v57 = vld [vmem:[%s1 + $0xe0] sm:$0xff]
    %v58 = vld [vmem:[%s1 + $0xe8] sm:$0xff]
    %v59 = vld [vmem:[%s1 + $0xf0] sm:$0xff]
    %v60 = vld [vmem:[%s1 + $0xf8] sm:$0x3]
    %v61 = vld [vmem:[%s2] sm:$0x1]
    %v63 = vperm.slane %v61, 0
    %vm65 = vcmask 998400
    %v67 = vsel %vm65, %v28, 0
    %vm69 = vcmask 1041408
    %v71 = vsel %vm69, %v60, 0
    %73 = vmatpush.msra.mxu0 %v44
    %74 = vmatpush.msra.mxu0 %v43
    %75 = vmatpush.msra.mxu0 %v42
    %76 = vmatpush.msra.mxu0 %v41
    %77 = vmatpush.msra.mxu0 %v40
    %78 = vmatpush.msra.mxu0 %v39
    %79 = vmatpush.msra.mxu0 %v38
    %80 = vmatpush.msra.mxu0 %v37
    %81 = vmatpush.msra.mxu0 %v36
    %82 = vmatpush.msra.mxu0 %v35
    %83 = vmatpush.msra.mxu0 %v34
    %84 = vmatpush.msra.mxu0 %v33
    %85 = vmatpush.msra.mxu0 %v32
    %86 = vmatpush.msra.mxu0 %v31
    %87 = vmatpush.msra.mxu0 %v30
    %88 = vmatpush.msra.mxu0 %v29
    %89 = vmatmul.f32.gmra.mxu0 %v27
    %v90 = vpop.f32.mrf.mxu0
    %v91 = vadd.f32 %v63, %v90
    %92 = vdwg.mxu0
    %93 = vmatpush.msra.mxu0 %v71
    %94 = vmatpush.msra.mxu0 %v59
    %95 = vmatpush.msra.mxu0 %v58
    %96 = vmatpush.msra.mxu0 %v57
    %97 = vmatpush.msra.mxu0 %v56
    %98 = vmatpush.msra.mxu0 %v55
    %99 = vmatpush.msra.mxu0 %v54
    %100 = vmatpush.msra.mxu0 %v53
    %101 = vmatpush.msra.mxu0 %v52
    %102 = vmatpush.msra.mxu0 %v51
    %103 = vmatpush.msra.mxu0 %v50
    %104 = vmatpush.msra.mxu0 %v49
    %105 = vmatpush.msra.mxu0 %v48
    %106 = vmatpush.msra.mxu0 %v47
    %107 = vmatpush.msra.mxu0 %v46
    %108 = vmatpush.msra.mxu0 %v45
    %109 = vmatmul.f32.gmra.mxu0 %v67
    %v110 = vpop.f32.mrf.mxu0
    %v111 = vadd.f32 %v91, %v110
    %112 = vdwg.mxu0
    %v113 = vtanh.pop %v111
    %v114 = vld [vmem:[%s3] sm:$0xff]
    %v115 = vld [vmem:[%s3 + $0x8] sm:$0xff]
    %v116 = vld [vmem:[%s3 + $0x10] sm:$0xff]
    %v117 = vld [vmem:[%s3 + $0x18] sm:$0xff]
    %v118 = vld [vmem:[%s3 + $0x20] sm:$0xff]
    %v119 = vld [vmem:[%s3 + $0x28] sm:$0xff]
    %v120 = vld [vmem:[%s3 + $0x30] sm:$0xff]
    %v121 = vld [vmem:[%s3 + $0x38] sm:$0xff]
    %v122 = vld [vmem:[%s4] sm:$0x1]
    %v124 = vperm.slane %v122, 0
    %vm126 = vcmask 523264
    %v128 = vsel %vm126, %v113, 0
    %130 = vmatpush.msra.mxu0 0.0
    %131 = vmatpush.msra.mxu0 0.0
    %132 = vmatpush.msra.mxu0 0.0
    %133 = vmatpush.msra.mxu0 0.0
    %134 = vmatpush.msra.mxu0 0.0
    %135 = vmatpush.msra.mxu0 0.0
    %136 = vmatpush.msra.mxu0 0.0
    %137 = vmatpush.msra.mxu0 0.0
    %138 = vmatpush.msra.mxu0 %v121
    %139 = vmatpush.msra.mxu0 %v120
    %140 = vmatpush.msra.mxu0 %v119
    %141 = vmatpush.msra.mxu0 %v118
    %142 = vmatpush.msra.mxu0 %v117
    %143 = vmatpush.msra.mxu0 %v116
    %144 = vmatpush.msra.mxu0 %v115
    %145 = vmatpush.msra.mxu0 %v114
    %146 = vmatmul.f32.gmra.mxu0 %v128
    %v147 = vpop.f32.mrf.mxu0
    %v148 = vadd.f32 %v124, %v147
    %149 = vdwg.mxu0
    %v150 = vtanh.pop %v148
    %v151 = vld [vmem:[%s5] sm:$0xff]
    %v152 = vld [vmem:[%s5 + $0x8] sm:$0xff]
    %v153 = vld [vmem:[%s5 + $0x10] sm:$0xff]
    %v154 = vld [vmem:[%s5 + $0x18] sm:$0xff]
    %v155 = vld [vmem:[%s6] sm:$0x1]
    %v157 = vperm.slane %v155, 0
    %vm159 = vcmask 261120
    %v161 = vsel %vm159, %v150, 0
    %163 = vmatpush.msra.mxu0 0.0
    %164 = vmatpush.msra.mxu0 0.0
    %165 = vmatpush.msra.mxu0 0.0
    %166 = vmatpush.msra.mxu0 0.0
    %167 = vmatpush.msra.mxu0 0.0
    %168 = vmatpush.msra.mxu0 0.0
    %169 = vmatpush.msra.mxu0 0.0
    %170 = vmatpush.msra.mxu0 0.0
    %171 = vmatpush.msra.mxu0 0.0
    %172 = vmatpush.msra.mxu0 0.0
    %173 = vmatpush.msra.mxu0 0.0
    %174 = vmatpush.msra.mxu0 0.0
    %175 = vmatpush.msra.mxu0 %v154
    %176 = vmatpush.msra.mxu0 %v153
    %177 = vmatpush.msra.mxu0 %v152
    %178 = vmatpush.msra.mxu0 %v151
    %179 = vmatmul.f32.gmra.mxu0 %v161
    %v180 = vpop.f32.mrf.mxu0
    %v181 = vadd.f32 %v157, %v180
    %182 = vdwg.mxu0
    %183 = vst [vmem:[#allocation2] sm:$0xff] %v181
    // Predicated region
    $region30: #{tpu_custom_call.1} parent=1 // pred_check
      _
    $region31: #{tpu_custom_call.1} parent=1 // pred_check_branch
      %185 = sbr.rel (0) target = $region33
    $region32: #{tpu_custom_call.1} parent=1 // pred_region
      %187 = vsyncadd [#allocation3], 0
      %s189 = sshll.u32 [#allocation2], 4
      %s190 = int_to_ptr.vmem [resolvable:$true] %s189
      %s191 = sshll.u32 %s7, 4
      %s192 = int_to_ptr.hbm [resolvable:$true] %s191
      %194 = dma.vmem_to_hbm [thread:$0]  %s190, 128, %s192, [#allocation3]
    $region33: #{tpu_custom_call.1} parent=1 // pred_fallthru
      _
    // Predicated region
    $region34: #{tpu_custom_call.1} parent=1 // pred_check
      _
    $region35: #{tpu_custom_call.1} parent=1 // pred_check_branch
      %196 = sbr.rel (0) target = $region37
    $region36: #{tpu_custom_call.1} parent=1 // pred_region
      %198 = dma.done [#allocation3], 128
    $region37: #{tpu_custom_call.1} parent=1 // pred_fallthru
      _
    %199 = vsyncpa [#allocation3], 1

</llo_original>
